<compile_context>
chip_gen: v5e
topology: v5e:2x2
jax: 0.10.0
libtpu: 0.0.40
codegen_flags: <defaults>
</compile_context>

<pallas_src>
import numpy as np
import jax
import jax.numpy as jnp
from jax.experimental import pallas as pl
from jax.experimental.pallas import tpu as pltpu


# --------------------------------------------------------------------------
# Kernel
# --------------------------------------------------------------------------
def _concat_kernel(*refs):
    """Concatenate all input blocks along the lane (feature) axis.

    Assembles the output tile in vregs and performs one store per tile.
    If the output block is wider than the sum of inputs (lane-dense padded
    output), the tail is zero-filled.
    """
    in_refs = refs[:-1]
    out_ref = refs[-1]
    parts = [r[...] for r in in_refs]
    rows = out_ref.shape[0]
    pad = out_ref.shape[1] - sum(p.shape[1] for p in parts)
    if pad > 0:  # static at trace time
        parts.append(jnp.zeros((rows, pad), dtype=out_ref.dtype))
    out_ref[...] = jnp.concatenate(parts, axis=-1)


# --------------------------------------------------------------------------
# Tile selection (padding-aware VMEM budget)
# --------------------------------------------------------------------------
def _ceil_to(x, m):
    return -(-int(x) // m) * m


def _pick_batch_tile(batch, dims, total, itemsize, *,
                     vmem_budget_bytes=12 * 1024 * 1024, sublane=8):
    """Choose a sublane-aligned batch tile from a padded-VMEM budget.

    Real per-row VMEM footprint (128-lane padding, double-buffered in+out):
        bytes/row = 2 * (sum_k pad128(d_k) + pad128(total)) * itemsize
    The 12 MiB default budget fits under the v5e 16 MiB scoped-VMEM default,
    so no vmem_limit_bytes override is needed on v5e/v6e/v7x.
    """
    padded_cols = sum(_ceil_to(d, 128) for d in dims) + _ceil_to(total, 128)
    bytes_per_row = max(1, 2 * padded_cols * itemsize)
    tb_cap = max(sublane, (vmem_budget_bytes // bytes_per_row) // sublane * sublane)

    if batch <= tb_cap:
        # Whole batch fits in one step.  If the single step is "big" (>2 MiB
        # of VMEM traffic), split it in two so v7x's two TensorCores both get
        # work ("parallel" axis with grid=(1,) leaves one core idle).
        if (batch % (2 * sublane) == 0
                and batch * bytes_per_row > (2 << 20)):
            return batch // 2
        return batch

    # batch > tile: 8-aligned tile; pl.cdiv + ragged last block handle the rest.
    return tb_cap


# --------------------------------------------------------------------------
# Wrapper (forward)
# --------------------------------------------------------------------------
def identity_encoder_forward(obs, keys, goal_keys=(), include_goal=False, *,
                             force_pallas=False,
                             pad_output_lanes=False,
                             batch_tile=None,
                             vmem_budget_bytes=12 * 1024 * 1024,
                             small_fallback_bytes=1 << 20):
    """JAX/Pallas equivalent of IdentityEncoder.forward (continuous_state=True).

    obs:       dict key -> array of shape (batch, dim_k), all same dtype
    keys:      tuple of obs keys (ndim==1 observation specs)
    goal_keys: tuple of goal keys (appended when include_goal=True)

    pad_output_lanes=True returns (batch, ceil(total, 128)) with zero pad
    (lane-dense stores); default returns the exact (batch, total) concat.
    """
    use_keys = tuple(keys) + (tuple(goal_keys) if include_goal else ())
    arrays = [obs[k] for k in use_keys]

    batch = arrays[0].shape[0]
    dtype = arrays[0].dtype
    for k, a in zip(use_keys, arrays):
        assert a.ndim == 2, f"obs[{k!r}] must be (batch, dim), got {a.shape}"
        assert a.shape[0] == batch, (
            f"obs[{k!r}] batch {a.shape[0]} != {batch} (key {use_keys[0]!r})")
        assert a.dtype == dtype, (
            f"obs[{k!r}] dtype {a.dtype} != {dtype} (key {use_keys[0]!r})")

    dims = [int(a.shape[-1]) for a in arrays]
    total = int(np.sum(dims))
    itemsize = jnp.dtype(dtype).itemsize
    out_cols = _ceil_to(total, 128) if pad_output_lanes else total

    # ---- Small-shape fast path: let XLA fuse the concat into the consumer.
    # A pallas_call custom-call boundary blocks that fusion and its launch +
    # per-step overhead exceeds the tiny data-movement cost.
    if not force_pallas and batch * total * itemsize < small_fallback_bytes:
        out = jnp.concatenate(arrays, axis=-1)
        if pad_output_lanes and out_cols > total:
            out = jnp.pad(out, ((0, 0), (0, out_cols - total)))
        return out
    # TODO(synk): for an even bigger win, fuse the concat into the first
    # downstream Linear (per-key partial matmuls into one f32 accumulator).

    # ---- Pallas path: batch-tiled, double-buffered copy/concat.
    if batch_tile is not None:
        tb = min(int(batch_tile), batch)
        if tb < batch and tb % 8 != 0:
            tb = max(8, (tb // 8) * 8)
    else:
        tb = _pick_batch_tile(batch, dims, total, itemsize,
                              vmem_budget_bytes=vmem_budget_bytes)
        tb = min(tb, batch)

    grid = (pl.cdiv(batch, tb),)

    # Pure data movement: read batch*total, write batch*out_cols.
    cost = pl.CostEstimate(
        flops=0,
        transcendentals=0,
        bytes_accessed=batch * (total + out_cols) * itemsize,
    )

    out = pl.pallas_call(
        _concat_kernel,
        out_shape=jax.ShapeDtypeStruct((batch, out_cols), dtype),
        grid=grid,
        in_specs=[
            pl.BlockSpec((tb, d), lambda i: (i, 0),
                         memory_space=pltpu.MemorySpace.VMEM)
            for d in dims
        ],
        out_specs=pl.BlockSpec((tb, out_cols), lambda i: (i, 0),
                               memory_space=pltpu.MemorySpace.VMEM),
        compiler_params=pltpu.CompilerParams(
            dimension_semantics=("parallel",),  # v7x: shard batch tiles over both TCs
        ),
        cost_estimate=cost,
    )(*arrays)
    return out


# TODO(synk): the discrete-state (one-hot) branch and the object_level_obs
# branch return Python lists of per-feature tensors (pure reshaping/indexing,
# no dense hot path) and the manipulation-test randn rescaling is test-only;
# they are left in plain JAX and not implemented here.


# --------------------------------------------------------------------------
# Self-test
# --------------------------------------------------------------------------
if __name__ == "__main__":
    # Synthetic "params": three 1-D observation keys + one goal key,
    # continuous_state=True, object_level_obs=False.
    obs_keys = ("robot_pos", "robot_vel", "object_pos")
    goal_keys = ("goal_pos",)
    obs_dims = {"robot_pos": 8, "robot_vel": 16, "object_pos": 8, "goal_pos": 8}

    def make_obs(batch, rng_key):
        o = {}
        k = rng_key
        for name in obs_keys + goal_keys:
            k, sub = jax.random.split(k)
            o[name] = jax.random.normal(sub, (batch, obs_dims[name]),
                                        dtype=jnp.float32)
        return o

    root = jax.random.PRNGKey(0)
    k_small, k_big = jax.random.split(root)

    # --- Small-shape check (batch=2): single full-array block.
    #     force_pallas=True so the kernel (not the jnp fallback) is exercised.
    obs_small = make_obs(2, k_small)

    out = identity_encoder_forward(obs_small, obs_keys, goal_keys,
                                   include_goal=False, force_pallas=True)
    out = jax.block_until_ready(out)
    out_goal = identity_encoder_forward(obs_small, obs_keys, goal_keys,
                                        include_goal=True, force_pallas=True)
    out_goal = jax.block_until_ready(out_goal)

    ref = jnp.concatenate([obs_small[k] for k in obs_keys], axis=-1)
    ref_goal = jnp.concatenate([obs_small[k] for k in obs_keys + goal_keys],
                               axis=-1)
    np.testing.assert_allclose(np.asarray(out), np.asarray(ref), rtol=0, atol=0)
    np.testing.assert_allclose(np.asarray(out_goal), np.asarray(ref_goal),
                               rtol=0, atol=0)
    assert out.dtype == ref.dtype and out_goal.dtype == ref_goal.dtype

    # --- Lane-dense (padded-to-128) output option at batch=2.
    out_pad = identity_encoder_forward(obs_small, obs_keys, goal_keys,
                                       include_goal=True, force_pallas=True,
                                       pad_output_lanes=True)
    out_pad = jax.block_until_ready(out_pad)
    assert out_pad.shape == (2, 128), out_pad.shape
    np.testing.assert_allclose(np.asarray(out_pad[:, :ref_goal.shape[-1]]),
                               np.asarray(ref_goal), rtol=0, atol=0)
    np.testing.assert_allclose(np.asarray(out_pad[:, ref_goal.shape[-1]:]),
                               0.0, rtol=0, atol=0)

    # --- Tiled path with a ragged last block (batch=20, tile=8 -> grid=(3,)):
    #     exercises pipelining + the non-dividing-batch path.
    obs_big = make_obs(20, k_big)
    out_big = identity_encoder_forward(obs_big, obs_keys, goal_keys,
                                       include_goal=True, force_pallas=True,
                                       batch_tile=8)
    out_big = jax.block_until_ready(out_big)
    ref_big = jnp.concatenate([obs_big[k] for k in obs_keys + goal_keys],
                              axis=-1)
    np.testing.assert_allclose(np.asarray(out_big), np.asarray(ref_big),
                               rtol=0, atol=0)

    # --- Small-shape fallback path (no force_pallas): plain jnp.concatenate.
    out_fb = identity_encoder_forward(obs_small, obs_keys, goal_keys,
                                      include_goal=True)
    out_fb = jax.block_until_ready(out_fb)
    np.testing.assert_allclose(np.asarray(out_fb), np.asarray(ref_goal),
                               rtol=0, atol=0)

    print("KERNEL_OK")
</pallas_src>

<mosaic_0001>
module attributes {stable_mosaic.version = 11 : i64} {
  func.func @_concat_kernel(%arg0: i32, %arg1: memref<2x8xf32, #tpu.memory_space<vmem>>, %arg2: memref<2x16xf32, #tpu.memory_space<vmem>>, %arg3: memref<2x8xf32, #tpu.memory_space<vmem>>, %arg4: memref<2x32xf32, #tpu.memory_space<vmem>>) attributes {dimension_semantics = [#tpu.dimension_semantics<parallel>], iteration_bounds = array<i64: 1>, scalar_prefetch = 0 : i64, scratch_operands = 0 : i64, tpu.core_type = #tpu.core_type<tc>, window_params = [{transform_indices = @transform_0, window_bounds = array<i64: 2, 8>}, {transform_indices = @transform_1, window_bounds = array<i64: 2, 16>}, {transform_indices = @transform_2, window_bounds = array<i64: 2, 8>}, {transform_indices = @transform_3, window_bounds = array<i64: 2, 32>}]} {
    %c0 = arith.constant 0 : index
    %c0_0 = arith.constant 0 : index
    %0 = vector.load %arg1[%c0, %c0_0] : memref<2x8xf32, #tpu.memory_space<vmem>>, vector<2x8xf32>
    %c0_1 = arith.constant 0 : index
    %c0_2 = arith.constant 0 : index
    %1 = vector.load %arg2[%c0_1, %c0_2] : memref<2x16xf32, #tpu.memory_space<vmem>>, vector<2x16xf32>
    %c0_3 = arith.constant 0 : index
    %c0_4 = arith.constant 0 : index
    %2 = vector.load %arg3[%c0_3, %c0_4] : memref<2x8xf32, #tpu.memory_space<vmem>>, vector<2x8xf32>
    %3 = tpu.concatenate %0, %1, %2 in 1 : vector<2x8xf32>, vector<2x16xf32>, vector<2x8xf32> -> vector<2x32xf32>
    %c0_5 = arith.constant 0 : index
    %c0_6 = arith.constant 0 : index
    %4 = vector.load %arg4[%c0_5, %c0_6] : memref<2x32xf32, #tpu.memory_space<vmem>>, vector<2x32xf32>
    tpu.vector_store %arg4[%c0_5, %c0_6], %3 {strides = array<i32>} : memref<2x32xf32, #tpu.memory_space<vmem>>, vector<2x32xf32>,
    return
  }
  func.func @transform_0(%arg0: i32) -> (i32, i32) {
    %c0_i32 = arith.constant 0 : i32
    %c0_i32_0 = arith.constant 0 : i32
    return %arg0, %c0_i32 : i32, i32
  }
  func.func @transform_1(%arg0: i32) -> (i32, i32) {
    %c0_i32 = arith.constant 0 : i32
    %c0_i32_0 = arith.constant 0 : i32
    return %arg0, %c0_i32 : i32, i32
  }
  func.func @transform_2(%arg0: i32) -> (i32, i32) {
    %c0_i32 = arith.constant 0 : i32
    %c0_i32_0 = arith.constant 0 : i32
    return %arg0, %c0_i32 : i32, i32
  }
  func.func @transform_3(%arg0: i32) -> (i32, i32) {
    %c0_i32 = arith.constant 0 : i32
    %c0_i32_0 = arith.constant 0 : i32
    return %arg0, %c0_i32 : i32, i32
  }
}

</mosaic_0001>

<llo_original>
// kernel: tpu_custom_call.1
$region0: #{tpu_custom_call.1}
  #allocation0 [shape = 'u32[]', space=smem, size = 0x4, offset = 0x4, fixed_abs, tag = 'smem constant byte address 0x4 - core index']
  #allocation1 [shape = 'u32[72,128]{1,0:T(1,128)}', space=vmem, size = 0x9000, scoped, tag = 'internal scratch']
  %s0 = inlined_call_operand.hbm [shape: f32[2,8], index: 0, kind: input, shape index: {}]
  %s1 = inlined_call_operand.hbm [shape: f32[2,16], index: 1, kind: input, shape index: {}]
  %s2 = inlined_call_operand.hbm [shape: f32[2,8], index: 2, kind: input, shape index: {}]
  %s3 = inlined_call_operand.hbm [shape: f32[2,32], index: 3, kind: output, shape index: {}]
  %s4 = sld [smem:[#allocation0]]
  $region34: #{tpu_custom_call.1} parent=0
    _
  %s6 = ssub.s32 1, %s4
  %s7 = scalar_select 0, %s6, %s4
  $region1: #{tpu_custom_call.1} parent=0
    #allocation2 [shape = 'u8[1024]{0}', space=vmem, size = 0x400, scoped, tag = 'input window, operand 0, single buffered']
    #allocation3 [shape = 's32[1]{0}', space=sflag, size = 0x4, scoped, tag = 'scoped memory for tpu_custom_call.1']
    #allocation4 [shape = 's32[1]{0}', space=sflag, size = 0x4, scoped, tag = 'scoped memory for tpu_custom_call.1']
    #allocation5 [shape = 'u8[1024]{0}', space=vmem, size = 0x400, scoped, tag = 'input window, operand 1, single buffered']
    #allocation6 [shape = 's32[1]{0}', space=sflag, size = 0x4, scoped, tag = 'scoped memory for tpu_custom_call.1']
    #allocation7 [shape = 'u8[1024]{0}', space=vmem, size = 0x400, scoped, tag = 'input window, operand 2, single buffered']
    #allocation8 [shape = 'u8[1024]{0}', space=vmem, size = 0x400, scoped, tag = 'output window, operand 0, single buffered']
    %8 = vsyncpa [#allocation3], 0
    %9 = vsyncpa [#allocation6], 0
    %10 = vsyncpa [#allocation4], 0
    // Predicated region
    $region2: #{tpu_custom_call.1} parent=1 // pred_check
      _
    $region3: #{tpu_custom_call.1} parent=1 // pred_check_branch
      %12 = sbr.rel (0) target = $region5
    $region4: #{tpu_custom_call.1} parent=1 // pred_region
      %14 = vsyncadd [#allocation3], 0
      %s16 = sshll.u32 %s0, 4
      %s17 = int_to_ptr.hbm [resolvable:$true] %s16
      %s18 = sshll.u32 [#allocation2], 4
      %s19 = int_to_ptr.vmem [resolvable:$true] %s18
      %21 = dma.hbm_to_vmem [thread:$0]  %s17, 32, %s19, [#allocation3]
    $region5: #{tpu_custom_call.1} parent=1 // pred_fallthru
      _
    // Predicated region
    $region6: #{tpu_custom_call.1} parent=1 // pred_check
      _
    $region7: #{tpu_custom_call.1} parent=1 // pred_check_branch
      %23 = sbr.rel (0) target = $region9
    $region8: #{tpu_custom_call.1} parent=1 // pred_region
      %25 = vsyncadd [#allocation6], 0
      %s27 = sshll.u32 %s1, 4
      %s28 = int_to_ptr.hbm [resolvable:$true] %s27
      %s29 = sshll.u32 [#allocation5], 4
      %s30 = int_to_ptr.vmem [resolvable:$true] %s29
      %32 = dma.hbm_to_vmem [thread:$0]  %s28, 32, %s30, [#allocation6]
    $region9: #{tpu_custom_call.1} parent=1 // pred_fallthru
      _
    // Predicated region
    $region10: #{tpu_custom_call.1} parent=1 // pred_check
      _
    $region11: #{tpu_custom_call.1} parent=1 // pred_check_branch
      %34 = sbr.rel (0) target = $region13
    $region12: #{tpu_custom_call.1} parent=1 // pred_region
      %36 = vsyncadd [#allocation6], 0
      %s38 = sshll.u32 %s2, 4
      %s39 = int_to_ptr.hbm [resolvable:$true] %s38
      %s40 = sshll.u32 [#allocation7], 4
      %s41 = int_to_ptr.vmem [resolvable:$true] %s40
      %43 = dma.hbm_to_vmem [thread:$0]  %s39, 32, %s41, [#allocation6]
    $region13: #{tpu_custom_call.1} parent=1 // pred_fallthru
      _
    // Predicated region
    $region14: #{tpu_custom_call.1} parent=1 // pred_check
      _
    $region15: #{tpu_custom_call.1} parent=1 // pred_check_branch
      %45 = sbr.rel (0) target = $region17
    $region16: #{tpu_custom_call.1} parent=1 // pred_region
      %47 = dma.done [#allocation3], 32
    $region17: #{tpu_custom_call.1} parent=1 // pred_fallthru
      _
    // Predicated region
    $region18: #{tpu_custom_call.1} parent=1 // pred_check
      _
    $region19: #{tpu_custom_call.1} parent=1 // pred_check_branch
      %49 = sbr.rel (0) target = $region21
    $region20: #{tpu_custom_call.1} parent=1 // pred_region
      %51 = dma.done [#allocation6], 32
    $region21: #{tpu_custom_call.1} parent=1 // pred_fallthru
      _
    // Predicated region
    $region22: #{tpu_custom_call.1} parent=1 // pred_check
      _
    $region23: #{tpu_custom_call.1} parent=1 // pred_check_branch
      %53 = sbr.rel (0) target = $region25
    $region24: #{tpu_custom_call.1} parent=1 // pred_region
      %55 = dma.done [#allocation6], 32
    $region25: #{tpu_custom_call.1} parent=1 // pred_fallthru
      _
    %v56 = vld [vmem:[#allocation2] sm:$0x3]
    %v57 = vld [vmem:[#allocation5] sm:$0x3]
    %v58 = vld [vmem:[#allocation7] sm:$0x3]
    %60 = vrot.lane.b32.xlu0 %v57, 8
    %v61 = vpop.permute.xlu0 %60
    %64 = vrot.lane.b32.xlu0 %v58, 24
    %v65 = vpop.permute.xlu0 %64
    %vm67 = vcmask 64512
    %v68 = vsel %vm67, %v56, %v61
    %vm69 = vcmask 195584
    %v70 = vsel %vm69, %v68, %v65
    %vm71 = vcmask 254976
    %72 = vst.msk [vmem:[#allocation8] sm:$0x3] %vm71, %v70
    // Predicated region
    $region26: #{tpu_custom_call.1} parent=1 // pred_check
      _
    $region27: #{tpu_custom_call.1} parent=1 // pred_check_branch
      %74 = sbr.rel (0) target = $region29
    $region28: #{tpu_custom_call.1} parent=1 // pred_region
      %76 = vsyncadd [#allocation4], 0
      %s78 = sshll.u32 [#allocation8], 4
      %s79 = int_to_ptr.vmem [resolvable:$true] %s78
      %s80 = sshll.u32 %s3, 4
      %s81 = int_to_ptr.hbm [resolvable:$true] %s80
      %83 = dma.vmem_to_hbm [thread:$0]  %s79, 32, %s81, [#allocation4]
    $region29: #{tpu_custom_call.1} parent=1 // pred_fallthru
      _
    // Predicated region
    $region30: #{tpu_custom_call.1} parent=1 // pred_check
      _
    $region31: #{tpu_custom_call.1} parent=1 // pred_check_branch
      %85 = sbr.rel (0) target = $region33
    $region32: #{tpu_custom_call.1} parent=1 // pred_region
      %87 = dma.done [#allocation4], 32
    $region33: #{tpu_custom_call.1} parent=1 // pred_fallthru
      _
    %88 = vsyncpa [#allocation3], 1
    %89 = vsyncpa [#allocation6], 1
    %90 = vsyncpa [#allocation4], 1

</llo_original>
